<compile_context>
chip_gen: v6e
topology: v6e:2x2x1
jax: 0.10.0
libtpu: 0.0.40
codegen_flags: <defaults>
</compile_context>

<pallas_src>
import functools
import math

import jax
import jax.numpy as jnp
from jax.experimental import pallas as pl
from jax.experimental.pallas import tpu as pltpu


# ---------------------------------------------------------------------------
# Helpers
# ---------------------------------------------------------------------------
def _cdiv(a, b):
    return -(-a // b)


def _round_up(x, m):
    return _cdiv(x, m) * m


def _pad2(a, rows, cols):
    r, c = a.shape
    if r == rows and c == cols:
        return a
    return jnp.pad(a, ((0, rows - r), (0, cols - c)))


def _sublane_multiple(dtype):
    # f32 -> 8 rows/vreg-tile, bf16 -> 16, int8/fp8 -> 32.
    itemsize = jnp.dtype(dtype).itemsize
    return max(8, 32 // max(itemsize, 1))


def _sigmoid_via_tanh(x):
    # Mathematically identical to sigmoid(x); one EUP push per element.
    return 0.5 * (jnp.tanh(0.5 * x) + 1.0)


def prepare_weights(w_hz, w_hn, *, dtype=jnp.bfloat16):
    """Transpose (PyTorch (out,in) -> (in,out)), lane-pad, and (optionally)
    down-cast the weights ONCE. bf16 storage halves resident VMEM and runs the
    MXU at its native rate; pass dtype=None to keep the original precision.

    Zero padding is semantically inert: padded input lanes are zero, so padded
    lanes never leak into real lanes, and dh on padded lanes is exactly 0.
    """
    h_dim = w_hz.shape[0]
    hp = max(_round_up(h_dim, 128), 128)

    def prep(w):
        wt = _pad2(jnp.transpose(w), hp, hp)
        return wt if dtype is None else wt.astype(dtype)

    return prep(w_hz), prep(w_hn)


def _physical_vmem_cap():
    try:
        return int(pltpu.get_tpu_info().vmem_capacity_bytes) - (8 << 20)
    except Exception:
        return 112 << 20  # conservative cap for 128 MiB parts


def _vmem_limit_bytes(hp, tb, w_dtype, h_dtype, *, weight_bufs, with_acc):
    """Request only what the kernel's buffers need (+ headroom), generation-aware."""
    wb = jnp.dtype(w_dtype).itemsize
    hb = jnp.dtype(h_dtype).itemsize
    need = 2 * weight_bufs * hp * hp * wb       # two resident weight matrices
    need += 2 * tb * hp * hb                    # double-buffered h tiles (in)
    need += 2 * tb * hp * hb                    # double-buffered dh/h_out tiles
    if with_acc:
        need += tb * hp * 4                     # f32 accumulator scratch
    need += max(need // 4, 4 << 20)             # compiler-internal headroom
    return int(min(max(need, 32 << 20), _physical_vmem_cap()))


def _choose_batch_tiling(b_dim, hp, h_dtype, *, max_tb=1024):
    """Pick (tile_rows, padded_batch): dtype-aware sublanes, hp-scaled tile,
    >= 2 tiles when the batch permits (megacore), minimal padding."""
    sub = _sublane_multiple(h_dtype)
    if hp <= 256:
        target = 1024
    elif hp <= 512:
        target = 512
    elif hp <= 1024:
        target = 256
    else:
        target = 128
    target = max(sub, min(target, max_tb))
    bp_min = _round_up(b_dim, sub)
    want_tiles = 2 if bp_min >= 2 * sub else 1
    n_tiles = max(want_tiles, _cdiv(bp_min, target))
    tb = _round_up(_cdiv(bp_min, n_tiles), sub)
    n_tiles = _cdiv(bp_min, tb)
    return tb, n_tiles * tb


# Cached capability flag: pl.Buffered(1) single-buffered weight specs.
_SINGLE_BUFFER_WEIGHTS_OK = True


def _maybe_single_buffered(run):
    """Try the single-buffered-weights build; fall back (once) if unsupported."""
    global _SINGLE_BUFFER_WEIGHTS_OK
    if _SINGLE_BUFFER_WEIGHTS_OK:
        try:
            return run(True)
        except Exception:
            _SINGLE_BUFFER_WEIGHTS_OK = False
    return run(False)


# ---------------------------------------------------------------------------
# Single-step kernel: dh = forward(t, h)   (matches the PyTorch module)
# ---------------------------------------------------------------------------
def _dh_kernel(h_ref, whz_ref, whn_ref, dh_ref):
    h_in = h_ref[...]
    h = h_in.astype(jnp.float32)                    # f32 for VPU/EUP elementwise
    h_mxu = h_in.astype(whz_ref.dtype)              # dtype-consistent MXU operand

    # z = sigmoid(h @ W_hz^T)      (the "x" term is identically zero)
    z = _sigmoid_via_tanh(
        jnp.dot(h_mxu, whz_ref[...], preferred_element_type=jnp.float32)
    )
    # n = tanh((z*h) @ W_hn^T)
    zh = (z * h).astype(whn_ref.dtype)
    n = jnp.tanh(jnp.dot(zh, whn_ref[...], preferred_element_type=jnp.float32))

    dh_ref[...] = ((1.0 - z) * (n - h)).astype(dh_ref.dtype)


def gru_ode_cell_autonomous(t, h, whz_t, whn_t, *, max_block_b=1024):
    """Pallas forward of GRUODECell_Autonomous.

    Args:
      t:      time (unused by the autonomous cell, kept for API parity).
      h:      (B, H) hidden state.
      whz_t:  (Hp, Hp) prepared lin_hz weight (prepare_weights).
      whn_t:  (Hp, Hp) prepared lin_hn weight.
    Returns:
      dh:     (B, H), same dtype as h.
    """
    del t  # autonomous: time does not enter the dynamics
    b_dim, h_dim = h.shape
    hp = whz_t.shape[0]
    assert whz_t.dtype == whn_t.dtype and whz_t.shape == whn_t.shape == (hp, hp)

    tb, bp = _choose_batch_tiling(b_dim, hp, h.dtype, max_tb=max_block_b)
    h_p = _pad2(h, bp, hp)

    def run(single_buffer):
        wspec_kw = {"pipeline_mode": pl.Buffered(1)} if single_buffer else {}
        vmem = _vmem_limit_bytes(hp, tb, whz_t.dtype, h.dtype,
                                 weight_bufs=1 if single_buffer else 2,
                                 with_acc=False)
        call = pl.pallas_call(
            _dh_kernel,
            out_shape=jax.ShapeDtypeStruct((bp, hp), h.dtype),
            grid_spec=pltpu.PrefetchScalarGridSpec(
                num_scalar_prefetch=0,
                grid=(bp // tb,),
                in_specs=[
                    pl.BlockSpec((tb, hp), lambda i: (i, 0)),             # h tile
                    pl.BlockSpec((hp, hp), lambda i: (0, 0), **wspec_kw),  # weights
                    pl.BlockSpec((hp, hp), lambda i: (0, 0), **wspec_kw),
                ],
                out_specs=pl.BlockSpec((tb, hp), lambda i: (i, 0)),
            ),
            compiler_params=pltpu.CompilerParams(
                dimension_semantics=("parallel",),        # megacore-shardable
                vmem_limit_bytes=vmem,
            ),
        )
        return call(h_p, whz_t, whn_t)

    dh_p = _maybe_single_buffered(run)
    return dh_p[:b_dim, :h_dim]


# ---------------------------------------------------------------------------
# Fused explicit-Euler ODE solve: one pallas_call for all steps.
# h_{k+1} = h_k + delta_t * dh(h_k); weights DMA'd once, h lives in VMEM.
# The batch tile is processed in `sub_tiles` independent row-chunks so the
# second chunk's matmuls overlap the first chunk's EUP/VPU epilogue.
# ---------------------------------------------------------------------------
def _solve_kernel(h0_ref, whz_ref, whn_ref, hout_ref, h_acc, *, delta_t, sub_tiles):
    step = pl.program_id(1)

    @pl.when(step == 0)
    def _():
        h_acc[...] = h0_ref[...].astype(jnp.float32)

    tb = h_acc.shape[0]
    chunk = tb // sub_tiles
    updates = []
    for s in range(sub_tiles):
        lo = s * chunk
        h = h_acc[lo:lo + chunk, :]
        z = _sigmoid_via_tanh(
            jnp.dot(h.astype(whz_ref.dtype), whz_ref[...],
                    preferred_element_type=jnp.float32)
        )
        zh = (z * h).astype(whn_ref.dtype)
        n = jnp.tanh(jnp.dot(zh, whn_ref[...],
                             preferred_element_type=jnp.float32))
        updates.append(h + delta_t * ((1.0 - z) * (n - h)))
    for s, upd in enumerate(updates):
        h_acc[s * chunk:(s + 1) * chunk, :] = upd

    @pl.when(step == pl.num_programs(1) - 1)
    def _():
        hout_ref[...] = h_acc[...].astype(hout_ref.dtype)


def gru_ode_autonomous_solve(h0, whz_t, whn_t, delta_t, n_steps, *, max_block_b=1024):
    """Integrate dh/dt for n_steps of explicit Euler inside one kernel."""
    b_dim, h_dim = h0.shape
    hp = whz_t.shape[0]
    assert whz_t.dtype == whn_t.dtype and whz_t.shape == whn_t.shape == (hp, hp)

    tb, bp = _choose_batch_tiling(b_dim, hp, h0.dtype, max_tb=max_block_b)
    h0_p = _pad2(h0, bp, hp)
    # Intra-tile 2-way split needs both row-chunks f32-sublane aligned.
    sub_tiles = 2 if (tb >= 16 and tb % 16 == 0) else 1
    kernel = functools.partial(_solve_kernel, delta_t=float(delta_t),
                               sub_tiles=sub_tiles)

    def run(single_buffer):
        wspec_kw = {"pipeline_mode": pl.Buffered(1)} if single_buffer else {}
        vmem = _vmem_limit_bytes(hp, tb, whz_t.dtype, h0.dtype,
                                 weight_bufs=1 if single_buffer else 2,
                                 with_acc=True)
        call = pl.pallas_call(
            kernel,
            out_shape=jax.ShapeDtypeStruct((bp, hp), h0.dtype),
            grid_spec=pltpu.PrefetchScalarGridSpec(
                num_scalar_prefetch=0,
                grid=(bp // tb, int(n_steps)),
                in_specs=[
                    pl.BlockSpec((tb, hp), lambda b, s: (b, 0)),   # h0: once/tile
                    pl.BlockSpec((hp, hp), lambda b, s: (0, 0), **wspec_kw),
                    pl.BlockSpec((hp, hp), lambda b, s: (0, 0), **wspec_kw),
                ],
                out_specs=pl.BlockSpec((tb, hp), lambda b, s: (b, 0)),
                scratch_shapes=[pltpu.VMEM((tb, hp), jnp.float32)],  # resident h
            ),
            input_output_aliases={0: 0},      # h_final reuses h0's HBM buffer
            compiler_params=pltpu.CompilerParams(
                dimension_semantics=("parallel", "arbitrary"),
                vmem_limit_bytes=vmem,
            ),
        )
        return call(h0_p, whz_t, whn_t)

    h_final = _maybe_single_buffered(run)
    return h_final[:b_dim, :h_dim]


# ---------------------------------------------------------------------------
# Pure-JAX references mirroring the PyTorch module
# ---------------------------------------------------------------------------
def _reference_dh(h, w_hz, w_hn):
    x = jnp.zeros_like(h)
    z = jax.nn.sigmoid(x + h @ w_hz.T)
    n = jnp.tanh(x + (z * h) @ w_hn.T)
    return (1.0 - z) * (n - h)


def _reference_solve(h0, w_hz, w_hn, delta_t, n_steps):
    def body(_, h):
        return h + delta_t * _reference_dh(h, w_hz, w_hn)
    return jax.lax.fori_loop(0, n_steps, body, h0)


if __name__ == "__main__":
    hidden_size = 32
    batch = 8

    key = jax.random.PRNGKey(0)
    k_h, k_wz, k_wn = jax.random.split(key, 3)

    # torch.nn.Linear default init: U(-1/sqrt(in), 1/sqrt(in)), (out,in), no bias.
    bound = 1.0 / math.sqrt(hidden_size)
    w_hz = jax.random.uniform(
        k_wz, (hidden_size, hidden_size), jnp.float32, -bound, bound
    )
    w_hn = jax.random.uniform(
        k_wn, (hidden_size, hidden_size), jnp.float32, -bound, bound
    )
    h = jax.random.normal(k_h, (batch, hidden_size), jnp.float32)
    t = jnp.float32(0.0)  # unused by the autonomous cell

    dh_ref = _reference_dh(h, w_hz, w_hn)

    # ---- exactness check: f32 weight path (tight tolerance) ----
    whz_f32, whn_f32 = prepare_weights(w_hz, w_hn, dtype=None)
    dh_f32 = jax.block_until_ready(gru_ode_cell_autonomous(t, h, whz_f32, whn_f32))
    assert dh_f32.shape == (batch, hidden_size)
    err_f32 = float(jnp.max(jnp.abs(dh_f32 - dh_ref)))
    assert jnp.allclose(dh_f32, dh_ref, atol=1e-5, rtol=1e-5), err_f32

    # ---- fast path: bf16 MXU operands, f32 accumulation/elementwise ----
    whz_bf, whn_bf = prepare_weights(w_hz, w_hn)          # bf16 by default
    dh_bf = jax.block_until_ready(gru_ode_cell_autonomous(t, h, whz_bf, whn_bf))
    err_bf = float(jnp.max(jnp.abs(dh_bf - dh_ref)))
    assert jnp.allclose(dh_bf, dh_ref, atol=5e-2, rtol=5e-2), err_bf

    # ---- fused multi-step Euler solve (time loop inside one kernel) ----
    n_steps, dt = 16, 0.05
    h_T = jax.block_until_ready(
        gru_ode_autonomous_solve(h, whz_bf, whn_bf, dt, n_steps)
    )
    h_T_ref = _reference_solve(h, w_hz, w_hn, dt, n_steps)
    err_T = float(jnp.max(jnp.abs(h_T - h_T_ref)))
    assert jnp.allclose(h_T, h_T_ref, atol=5e-2, rtol=5e-2), err_T

    print("KERNEL_OK")
</pallas_src>

<mosaic_0001>
module attributes {stable_mosaic.version = 11 : i64} {
  func.func @_dh_kernel(%arg0: i32, %arg1: memref<8x128xf32, #tpu.memory_space<vmem>>, %arg2: memref<128x128xf32, #tpu.memory_space<vmem>>, %arg3: memref<128x128xf32, #tpu.memory_space<vmem>>, %arg4: memref<8x128xf32, #tpu.memory_space<vmem>>) attributes {dimension_semantics = [#tpu.dimension_semantics<parallel>], iteration_bounds = array<i64: 1>, scalar_prefetch = 0 : i64, scratch_operands = 0 : i64, tpu.core_type = #tpu.core_type<tc>, window_params = [{transform_indices = @transform_0, window_bounds = array<i64: 8, 128>}, {pipeline_mode = #tpu.pipeline_mode<synchronous>, transform_indices = @transform_1, window_bounds = array<i64: 128, 128>}, {pipeline_mode = #tpu.pipeline_mode<synchronous>, transform_indices = @transform_2, window_bounds = array<i64: 128, 128>}, {transform_indices = @transform_3, window_bounds = array<i64: 8, 128>}]} {
    %c0 = arith.constant 0 : index
    %c0_0 = arith.constant 0 : index
    %0 = vector.load %arg1[%c0, %c0_0] : memref<8x128xf32, #tpu.memory_space<vmem>>, vector<8x128xf32>
    %c0_1 = arith.constant 0 : index
    %c0_2 = arith.constant 0 : index
    %1 = vector.load %arg2[%c0_1, %c0_2] : memref<128x128xf32, #tpu.memory_space<vmem>>, vector<128x128xf32>
    %cst = arith.constant dense<0.000000e+00> : vector<8x128xf32>
    %2 = tpu.matmul %0, %1, %cst {dimension_numbers = #tpu.dot_dimension_numbers<[1], [0], [0], [1], [0, 0, 1, 1], [], []>} : vector<8x128xf32>, vector<128x128xf32>, vector<8x128xf32> -> vector<8x128xf32>
    %cst_3 = arith.constant 5.000000e-01 : f32
    %3 = vector.broadcast %cst_3 : f32 to vector<8x128xf32>
    %4 = arith.mulf %3, %2 : vector<8x128xf32>
    %5 = math.tanh %4 : vector<8x128xf32>
    %cst_4 = arith.constant 1.000000e+00 : f32
    %6 = vector.broadcast %cst_4 : f32 to vector<8x128xf32>
    %7 = arith.addf %5, %6 : vector<8x128xf32>
    %cst_5 = arith.constant 5.000000e-01 : f32
    %8 = vector.broadcast %cst_5 : f32 to vector<8x128xf32>
    %9 = arith.mulf %8, %7 : vector<8x128xf32>
    %10 = arith.mulf %9, %0 : vector<8x128xf32>
    %c0_6 = arith.constant 0 : index
    %c0_7 = arith.constant 0 : index
    %11 = vector.load %arg3[%c0_6, %c0_7] : memref<128x128xf32, #tpu.memory_space<vmem>>, vector<128x128xf32>
    %cst_8 = arith.constant dense<0.000000e+00> : vector<8x128xf32>
    %12 = tpu.matmul %10, %11, %cst_8 {dimension_numbers = #tpu.dot_dimension_numbers<[1], [0], [0], [1], [0, 0, 1, 1], [], []>} : vector<8x128xf32>, vector<128x128xf32>, vector<8x128xf32> -> vector<8x128xf32>
    %13 = math.tanh %12 : vector<8x128xf32>
    %cst_9 = arith.constant 1.000000e+00 : f32
    %14 = vector.broadcast %cst_9 : f32 to vector<8x128xf32>
    %15 = arith.subf %14, %9 : vector<8x128xf32>
    %16 = arith.subf %13, %0 : vector<8x128xf32>
    %17 = arith.mulf %15, %16 : vector<8x128xf32>
    %c0_10 = arith.constant 0 : index
    %c0_11 = arith.constant 0 : index
    %18 = vector.load %arg4[%c0_10, %c0_11] : memref<8x128xf32, #tpu.memory_space<vmem>>, vector<8x128xf32>
    tpu.vector_store %arg4[%c0_10, %c0_11], %17 {strides = array<i32>} : memref<8x128xf32, #tpu.memory_space<vmem>>, vector<8x128xf32>,
    return
  }
  func.func @transform_0(%arg0: i32) -> (i32, i32) {
    %c0_i32 = arith.constant 0 : i32
    %c0_i32_0 = arith.constant 0 : i32
    return %arg0, %c0_i32 : i32, i32
  }
  func.func @transform_1(%arg0: i32) -> (i32, i32) {
    %c0_i32 = arith.constant 0 : i32
    %c0_i32_0 = arith.constant 0 : i32
    %c0_i32_1 = arith.constant 0 : i32
    return %c0_i32, %c0_i32_0 : i32, i32
  }
  func.func @transform_2(%arg0: i32) -> (i32, i32) {
    %c0_i32 = arith.constant 0 : i32
    %c0_i32_0 = arith.constant 0 : i32
    %c0_i32_1 = arith.constant 0 : i32
    return %c0_i32, %c0_i32_0 : i32, i32
  }
  func.func @transform_3(%arg0: i32) -> (i32, i32) {
    %c0_i32 = arith.constant 0 : i32
    %c0_i32_0 = arith.constant 0 : i32
    return %arg0, %c0_i32 : i32, i32
  }
}

module attributes {stable_mosaic.version = 11 : i64} {
  func.func @_dh_kernel(%arg0: i32, %arg1: memref<8x128xf32, #tpu.memory_space<vmem>>, %arg2: memref<128x128xf32, #tpu.memory_space<vmem>>, %arg3: memref<128x128xf32, #tpu.memory_space<vmem>>, %arg4: memref<8x128xf32, #tpu.memory_space<vmem>>) attributes {dimension_semantics = [#tpu.dimension_semantics<parallel>], iteration_bounds = array<i64: 1>, scalar_prefetch = 0 : i64, scratch_operands = 0 : i64, tpu.core_type = #tpu.core_type<tc>, window_params = [{transform_indices = @transform_0, window_bounds = array<i64: 8, 128>}, {pipeline_mode = #tpu.pipeline_mode<synchronous>, transform_indices = @transform_1, window_bounds = array<i64: 128, 128>}, {pipeline_mode = #tpu.pipeline_mode<synchronous>, transform_indices = @transform_2, window_bounds = array<i64: 128, 128>}, {transform_indices = @transform_3, window_bounds = array<i64: 8, 128>}]} {
    %c0 = arith.constant 0 : index
    %c0_0 = arith.constant 0 : index
    %0 = vector.load %arg1[%c0, %c0_0] : memref<8x128xf32, #tpu.memory_space<vmem>>, vector<8x128xf32>
    %c0_1 = arith.constant 0 : index
    %c0_2 = arith.constant 0 : index
    %1 = vector.load %arg2[%c0_1, %c0_2] : memref<128x128xf32, #tpu.memory_space<vmem>>, vector<128x128xf32>
    %cst = arith.constant dense<0.000000e+00> : vector<8x128xf32>
    %2 = tpu.matmul %0, %1, %cst {dimension_numbers = #tpu.dot_dimension_numbers<[1], [0], [0], [1], [0, 0, 1, 1], [], []>} : vector<8x128xf32>, vector<128x128xf32>, vector<8x128xf32> -> vector<8x128xf32>
    %cst_3 = arith.constant 5.000000e-01 : f32
    %3 = vector.broadcast %cst_3 : f32 to vector<8x128xf32>
    %4 = arith.mulf %3, %2 : vector<8x128xf32>
    %5 = math.tanh %4 : vector<8x128xf32>
    %cst_4 = arith.constant 1.000000e+00 : f32
    %6 = vector.broadcast %cst_4 : f32 to vector<8x128xf32>
    %7 = arith.addf %5, %6 : vector<8x128xf32>
    %cst_5 = arith.constant 5.000000e-01 : f32
    %8 = vector.broadcast %cst_5 : f32 to vector<8x128xf32>
    %9 = arith.mulf %8, %7 : vector<8x128xf32>
    %10 = arith.mulf %9, %0 : vector<8x128xf32>
    %c0_6 = arith.constant 0 : index
    %c0_7 = arith.constant 0 : index
    %11 = vector.load %arg3[%c0_6, %c0_7] : memref<128x128xf32, #tpu.memory_space<vmem>>, vector<128x128xf32>
    %cst_8 = arith.constant dense<0.000000e+00> : vector<8x128xf32>
    %12 = tpu.matmul %10, %11, %cst_8 {dimension_numbers = #tpu.dot_dimension_numbers<[1], [0], [0], [1], [0, 0, 1, 1], [], []>} : vector<8x128xf32>, vector<128x128xf32>, vector<8x128xf32> -> vector<8x128xf32>
    %13 = math.tanh %12 : vector<8x128xf32>
    %cst_9 = arith.constant 1.000000e+00 : f32
    %14 = vector.broadcast %cst_9 : f32 to vector<8x128xf32>
    %15 = arith.subf %14, %9 : vector<8x128xf32>
    %16 = arith.subf %13, %0 : vector<8x128xf32>
    %17 = arith.mulf %15, %16 : vector<8x128xf32>
    %c0_10 = arith.constant 0 : index
    %c0_11 = arith.constant 0 : index
    %18 = vector.load %arg4[%c0_10, %c0_11] : memref<8x128xf32, #tpu.memory_space<vmem>>, vector<8x128xf32>
    tpu.vector_store %arg4[%c0_10, %c0_11], %17 {strides = array<i32>} : memref<8x128xf32, #tpu.memory_space<vmem>>, vector<8x128xf32>,
    return
  }
  func.func @transform_0(%arg0: i32) -> (i32, i32) {
    %c0_i32 = arith.constant 0 : i32
    %c0_i32_0 = arith.constant 0 : i32
    return %arg0, %c0_i32 : i32, i32
  }
  func.func @transform_1(%arg0: i32) -> (i32, i32) {
    %c0_i32 = arith.constant 0 : i32
    %c0_i32_0 = arith.constant 0 : i32
    %c0_i32_1 = arith.constant 0 : i32
    return %c0_i32, %c0_i32_0 : i32, i32
  }
  func.func @transform_2(%arg0: i32) -> (i32, i32) {
    %c0_i32 = arith.constant 0 : i32
    %c0_i32_0 = arith.constant 0 : i32
    %c0_i32_1 = arith.constant 0 : i32
    return %c0_i32, %c0_i32_0 : i32, i32
  }
  func.func @transform_3(%arg0: i32) -> (i32, i32) {
    %c0_i32 = arith.constant 0 : i32
    %c0_i32_0 = arith.constant 0 : i32
    return %arg0, %c0_i32 : i32, i32
  }
}

</mosaic_0001>

<llo_original>
// kernel: tpu_custom_call.1
$region0: #{tpu_custom_call.1}
  #allocation0 [shape = 'u32[]', space=smem, size = 0x4, offset = 0x4, fixed_abs, tag = 'smem constant byte address 0x4 - core index']
  #allocation1 [shape = 'u32[144,128]{1,0:T(1,128)}', space=vmem, size = 0x12000, scoped, tag = 'internal scratch']
  %s0 = inlined_call_operand.hbm [shape: f32[8,128], index: 0, kind: input, shape index: {}]
  %s1 = inlined_call_operand.hbm [shape: f32[128,128], index: 1, kind: input, shape index: {}]
  %s2 = inlined_call_operand.hbm [shape: f32[128,128], index: 2, kind: input, shape index: {}]
  %s3 = inlined_call_operand.hbm [shape: f32[8,128], index: 3, kind: output, shape index: {}]
  %s4 = sld [smem:[#allocation0]]
  $region34: #{tpu_custom_call.1} parent=0
    _
  %s6 = ssub.s32 1, %s4
  %s7 = scalar_select 0, %s6, %s4
  $region1: #{tpu_custom_call.1} parent=0
    #allocation2 [shape = 'u8[4096]{0}', space=vmem, size = 0x1000, scoped, tag = 'input window, operand 0, single buffered']
    #allocation3 [shape = 's32[1]{0}', space=sflag, size = 0x4, scoped, tag = 'scoped memory for tpu_custom_call.1']
    #allocation4 [shape = 's32[1]{0}', space=sflag, size = 0x4, scoped, tag = 'scoped memory for tpu_custom_call.1']
    #allocation5 [shape = 'u8[65536]{0}', space=vmem, size = 0x10000, scoped, tag = 'input window, operand 1, single buffered']
    #allocation6 [shape = 's32[1]{0}', space=sflag, size = 0x4, scoped, tag = 'scoped memory for tpu_custom_call.1']
    #allocation7 [shape = 'u8[65536]{0}', space=vmem, size = 0x10000, scoped, tag = 'input window, operand 2, single buffered']
    #allocation8 [shape = 'u8[4096]{0}', space=vmem, size = 0x1000, scoped, tag = 'output window, operand 0, single buffered']
    %8 = vsyncpa [#allocation3], 0
    %9 = vsyncpa [#allocation6], 0
    %10 = vsyncpa [#allocation4], 0
    // Predicated region
    $region2: #{tpu_custom_call.1} parent=1 // pred_check
      _
    $region3: #{tpu_custom_call.1} parent=1 // pred_check_branch
      %12 = sbr.rel (0) target = $region5
    $region4: #{tpu_custom_call.1} parent=1 // pred_region
      %s14 = ssub.s32 128, 128
      %15 = vsyncadd [#allocation3], %s14
      %s17 = sshll.u32 [#allocation2], 4
      %s18 = int_to_ptr.vmem [resolvable:$true] %s17
      %20 = dma.hbm_to_vmem [thread:$0]  %s0, 128, %s18, [#allocation3]
    $region5: #{tpu_custom_call.1} parent=1 // pred_fallthru
      _
    // Predicated region
    $region6: #{tpu_custom_call.1} parent=1 // pred_check
      _
    $region7: #{tpu_custom_call.1} parent=1 // pred_check_branch
      %22 = sbr.rel (0) target = $region9
    $region8: #{tpu_custom_call.1} parent=1 // pred_region
      %s24 = ssub.s32 2048, 2048
      %25 = vsyncadd [#allocation6], %s24
      %s26 = sshll.u32 [#allocation5], 4
      %s27 = int_to_ptr.vmem [resolvable:$true] %s26
      %32 = dma.hbm_to_vmem [thread:$0]  %s1, 2048, %s27, [#allocation6], 128, 128, 8
    $region9: #{tpu_custom_call.1} parent=1 // pred_fallthru
      _
    // Predicated region
    $region10: #{tpu_custom_call.1} parent=1 // pred_check
      _
    $region11: #{tpu_custom_call.1} parent=1 // pred_check_branch
      %34 = sbr.rel (0) target = $region13
    $region12: #{tpu_custom_call.1} parent=1 // pred_region
      %s36 = ssub.s32 2048, 2048
      %37 = vsyncadd [#allocation6], %s36
      %s38 = sshll.u32 [#allocation7], 4
      %s39 = int_to_ptr.vmem [resolvable:$true] %s38
      %44 = dma.hbm_to_vmem [thread:$0]  %s2, 2048, %s39, [#allocation6], 128, 128, 8
    $region13: #{tpu_custom_call.1} parent=1 // pred_fallthru
      _
    // Predicated region
    $region14: #{tpu_custom_call.1} parent=1 // pred_check
      _
    $region15: #{tpu_custom_call.1} parent=1 // pred_check_branch
      %46 = sbr.rel (0) target = $region17
    $region16: #{tpu_custom_call.1} parent=1 // pred_region
      %47 = dma.done [#allocation3], 128
    $region17: #{tpu_custom_call.1} parent=1 // pred_fallthru
      _
    // Predicated region
    $region18: #{tpu_custom_call.1} parent=1 // pred_check
      _
    $region19: #{tpu_custom_call.1} parent=1 // pred_check_branch
      %49 = sbr.rel (0) target = $region21
    $region20: #{tpu_custom_call.1} parent=1 // pred_region
      %50 = dma.done [#allocation6], 2048
    $region21: #{tpu_custom_call.1} parent=1 // pred_fallthru
      _
    // Predicated region
    $region22: #{tpu_custom_call.1} parent=1 // pred_check
      _
    $region23: #{tpu_custom_call.1} parent=1 // pred_check_branch
      %52 = sbr.rel (0) target = $region25
    $region24: #{tpu_custom_call.1} parent=1 // pred_region
      %53 = dma.done [#allocation6], 2048
    $region25: #{tpu_custom_call.1} parent=1 // pred_fallthru
      _
    %v54 = vld [vmem:[#allocation2] sm:$0xff]
    %v55 = vld [vmem:[#allocation5] sm:$0xff]
    %v56 = vld [vmem:[#allocation5 + $0x8] sm:$0xff]
    %v57 = vld [vmem:[#allocation5 + $0x10] sm:$0xff]
    %v58 = vld [vmem:[#allocation5 + $0x18] sm:$0xff]
    %v59 = vld [vmem:[#allocation5 + $0x20] sm:$0xff]
    %v60 = vld [vmem:[#allocation5 + $0x28] sm:$0xff]
    %v61 = vld [vmem:[#allocation5 + $0x30] sm:$0xff]
    %v62 = vld [vmem:[#allocation5 + $0x38] sm:$0xff]
    %v63 = vld [vmem:[#allocation5 + $0x40] sm:$0xff]
    %v64 = vld [vmem:[#allocation5 + $0x48] sm:$0xff]
    %v65 = vld [vmem:[#allocation5 + $0x50] sm:$0xff]
    %v66 = vld [vmem:[#allocation5 + $0x58] sm:$0xff]
    %v67 = vld [vmem:[#allocation5 + $0x60] sm:$0xff]
    %v68 = vld [vmem:[#allocation5 + $0x68] sm:$0xff]
    %v69 = vld [vmem:[#allocation5 + $0x70] sm:$0xff]
    %v70 = vld [vmem:[#allocation5 + $0x78] sm:$0xff]
    %71 = vmatprep.subr.mxu0 0.0
    %72 = vmatpush1.msra.mxu0 %v70
    %73 = vmatprep.subr.mxu0 0.0
    %74 = vmatpush1.msra.mxu0 %v69
    %75 = vmatprep.subr.mxu0 0.0
    %76 = vmatpush1.msra.mxu0 %v68
    %77 = vmatprep.subr.mxu0 0.0
    %78 = vmatpush1.msra.mxu0 %v67
    %79 = vmatprep.subr.mxu0 0.0
    %80 = vmatpush1.msra.mxu0 %v66
    %81 = vmatprep.subr.mxu0 0.0
    %82 = vmatpush1.msra.mxu0 %v65
    %83 = vmatprep.subr.mxu0 0.0
    %84 = vmatpush1.msra.mxu0 %v64
    %85 = vmatprep.subr.mxu0 0.0
    %86 = vmatpush1.msra.mxu0 %v63
    %87 = vmatprep.subr.mxu0 0.0
    %88 = vmatpush1.msra.mxu0 %v62
    %89 = vmatprep.subr.mxu0 0.0
    %90 = vmatpush1.msra.mxu0 %v61
    %91 = vmatprep.subr.mxu0 0.0
    %92 = vmatpush1.msra.mxu0 %v60
    %93 = vmatprep.subr.mxu0 0.0
    %94 = vmatpush1.msra.mxu0 %v59
    %95 = vmatprep.subr.mxu0 0.0
    %96 = vmatpush1.msra.mxu0 %v58
    %97 = vmatprep.subr.mxu0 0.0
    %98 = vmatpush1.msra.mxu0 %v57
    %99 = vmatprep.subr.mxu0 0.0
    %100 = vmatpush1.msra.mxu0 %v56
    %101 = vmatprep.subr.mxu0 0.0
    %102 = vmatpush1.msra.mxu0 %v55
    %103 = vmatprep.subr.mxu0 0.0
    %104 = vmatpush2.msra.mxu0 0.0
    %105 = vmatprep.subr.mxu0 0.0
    %106 = vmatpush2.msra.mxu0 0.0
    %107 = vmatprep.subr.mxu0 0.0
    %108 = vmatpush2.msra.mxu0 0.0
    %109 = vmatprep.subr.mxu0 0.0
    %110 = vmatpush2.msra.mxu0 0.0
    %111 = vmatprep.subr.mxu0 0.0
    %112 = vmatpush2.msra.mxu0 0.0
    %113 = vmatprep.subr.mxu0 0.0
    %114 = vmatpush2.msra.mxu0 0.0
    %115 = vmatprep.subr.mxu0 0.0
    %116 = vmatpush2.msra.mxu0 0.0
    %117 = vmatprep.subr.mxu0 0.0
    %118 = vmatpush2.msra.mxu0 0.0
    %119 = vmatprep.subr.mxu0 0.0
    %120 = vmatpush2.msra.mxu0 0.0
    %121 = vmatprep.subr.mxu0 0.0
    %122 = vmatpush2.msra.mxu0 0.0
    %123 = vmatprep.subr.mxu0 0.0
    %124 = vmatpush2.msra.mxu0 0.0
    %125 = vmatprep.subr.mxu0 0.0
    %126 = vmatpush2.msra.mxu0 0.0
    %127 = vmatprep.subr.mxu0 0.0
    %128 = vmatpush2.msra.mxu0 0.0
    %129 = vmatprep.subr.mxu0 0.0
    %130 = vmatpush2.msra.mxu0 0.0
    %131 = vmatprep.subr.mxu0 0.0
    %132 = vmatpush2.msra.mxu0 0.0
    %133 = vmatprep.subr.mxu0 0.0
    %134 = vmatpush2.msra.mxu0 0.0
    %135 = vmatprep.mubr.f32.mxu0 0.0
    %136 = vmatmul.mubr.f32.gmra.mxu0 %v54
    %v137 = vpop.f32.mrf.mxu0
    %v138 = vadd.f32 0.0, %v137
    %v139 = vpop.f32.mrf.mxu0
    %140 = vdwg.mxu0
    %v141 = vmul.f32 %v138, 0.5
    %v142 = vtanh.pop %v141
    %v143 = vadd.f32 %v142, 1.0
    %v144 = vmul.f32 %v143, 0.5
    %v145 = vmul.f32 %v144, %v54
    %v146 = vld [vmem:[#allocation7] sm:$0xff]
    %v147 = vld [vmem:[#allocation7 + $0x8] sm:$0xff]
    %v148 = vld [vmem:[#allocation7 + $0x10] sm:$0xff]
    %v149 = vld [vmem:[#allocation7 + $0x18] sm:$0xff]
    %v150 = vld [vmem:[#allocation7 + $0x20] sm:$0xff]
    %v151 = vld [vmem:[#allocation7 + $0x28] sm:$0xff]
    %v152 = vld [vmem:[#allocation7 + $0x30] sm:$0xff]
    %v153 = vld [vmem:[#allocation7 + $0x38] sm:$0xff]
    %v154 = vld [vmem:[#allocation7 + $0x40] sm:$0xff]
    %v155 = vld [vmem:[#allocation7 + $0x48] sm:$0xff]
    %v156 = vld [vmem:[#allocation7 + $0x50] sm:$0xff]
    %v157 = vld [vmem:[#allocation7 + $0x58] sm:$0xff]
    %v158 = vld [vmem:[#allocation7 + $0x60] sm:$0xff]
    %v159 = vld [vmem:[#allocation7 + $0x68] sm:$0xff]
    %v160 = vld [vmem:[#allocation7 + $0x70] sm:$0xff]
    %v161 = vld [vmem:[#allocation7 + $0x78] sm:$0xff]
    %162 = vmatprep.subr.mxu0 0.0
    %163 = vmatpush1.msra.mxu0 %v161
    %164 = vmatprep.subr.mxu0 0.0
    %165 = vmatpush1.msra.mxu0 %v160
    %166 = vmatprep.subr.mxu0 0.0
    %167 = vmatpush1.msra.mxu0 %v159
    %168 = vmatprep.subr.mxu0 0.0
    %169 = vmatpush1.msra.mxu0 %v158
    %170 = vmatprep.subr.mxu0 0.0
    %171 = vmatpush1.msra.mxu0 %v157
    %172 = vmatprep.subr.mxu0 0.0
    %173 = vmatpush1.msra.mxu0 %v156
    %174 = vmatprep.subr.mxu0 0.0
    %175 = vmatpush1.msra.mxu0 %v155
    %176 = vmatprep.subr.mxu0 0.0
    %177 = vmatpush1.msra.mxu0 %v154
    %178 = vmatprep.subr.mxu0 0.0
    %179 = vmatpush1.msra.mxu0 %v153
    %180 = vmatprep.subr.mxu0 0.0
    %181 = vmatpush1.msra.mxu0 %v152
    %182 = vmatprep.subr.mxu0 0.0
    %183 = vmatpush1.msra.mxu0 %v151
    %184 = vmatprep.subr.mxu0 0.0
    %185 = vmatpush1.msra.mxu0 %v150
    %186 = vmatprep.subr.mxu0 0.0
    %187 = vmatpush1.msra.mxu0 %v149
    %188 = vmatprep.subr.mxu0 0.0
    %189 = vmatpush1.msra.mxu0 %v148
    %190 = vmatprep.subr.mxu0 0.0
    %191 = vmatpush1.msra.mxu0 %v147
    %192 = vmatprep.subr.mxu0 0.0
    %193 = vmatpush1.msra.mxu0 %v146
    %194 = vmatprep.subr.mxu0 0.0
    %195 = vmatpush2.msra.mxu0 0.0
    %196 = vmatprep.subr.mxu0 0.0
    %197 = vmatpush2.msra.mxu0 0.0
    %198 = vmatprep.subr.mxu0 0.0
    %199 = vmatpush2.msra.mxu0 0.0
    %200 = vmatprep.subr.mxu0 0.0
    %201 = vmatpush2.msra.mxu0 0.0
    %202 = vmatprep.subr.mxu0 0.0
    %203 = vmatpush2.msra.mxu0 0.0
    %204 = vmatprep.subr.mxu0 0.0
    %205 = vmatpush2.msra.mxu0 0.0
    %206 = vmatprep.subr.mxu0 0.0
    %207 = vmatpush2.msra.mxu0 0.0
    %208 = vmatprep.subr.mxu0 0.0
    %209 = vmatpush2.msra.mxu0 0.0
    %210 = vmatprep.subr.mxu0 0.0
    %211 = vmatpush2.msra.mxu0 0.0
    %212 = vmatprep.subr.mxu0 0.0
    %213 = vmatpush2.msra.mxu0 0.0
    %214 = vmatprep.subr.mxu0 0.0
    %215 = vmatpush2.msra.mxu0 0.0
    %216 = vmatprep.subr.mxu0 0.0
    %217 = vmatpush2.msra.mxu0 0.0
    %218 = vmatprep.subr.mxu0 0.0
    %219 = vmatpush2.msra.mxu0 0.0
    %220 = vmatprep.subr.mxu0 0.0
    %221 = vmatpush2.msra.mxu0 0.0
    %222 = vmatprep.subr.mxu0 0.0
    %223 = vmatpush2.msra.mxu0 0.0
    %224 = vmatprep.subr.mxu0 0.0
    %225 = vmatpush2.msra.mxu0 0.0
    %226 = vmatprep.mubr.f32.mxu0 0.0
    %227 = vmatmul.mubr.f32.gmra.mxu0 %v145
    %v228 = vpop.f32.mrf.mxu0
    %v229 = vadd.f32 0.0, %v228
    %v230 = vpop.f32.mrf.mxu0
    %231 = vdwg.mxu0
    %v232 = vtanh.pop %v229
    %v233 = vsub.f32 1.0, %v144
    %v234 = vsub.f32 %v232, %v54
    %v235 = vmul.f32 %v233, %v234
    %236 = vst [vmem:[#allocation8] sm:$0xff] %v235
    // Predicated region
    $region26: #{tpu_custom_call.1} parent=1 // pred_check
      _
    $region27: #{tpu_custom_call.1} parent=1 // pred_check_branch
      %238 = sbr.rel (0) target = $region29
    $region28: #{tpu_custom_call.1} parent=1 // pred_region
      %s240 = ssub.s32 128, 128
      %241 = vsyncadd [#allocation4], %s240
      %s243 = sshll.u32 [#allocation8], 4
      %s244 = int_to_ptr.vmem [resolvable:$true] %s243
      %246 = dma.vmem_to_hbm [thread:$0]  %s244, 128, %s3, [#allocation4]
    $region29: #{tpu_custom_call.1} parent=1 // pred_fallthru
      _
    // Predicated region
    $region30: #{tpu_custom_call.1} parent=1 // pred_check
      _
    $region31: #{tpu_custom_call.1} parent=1 // pred_check_branch
      %248 = sbr.rel (0) target = $region33
    $region32: #{tpu_custom_call.1} parent=1 // pred_region
      %249 = dma.done [#allocation4], 128
    $region33: #{tpu_custom_call.1} parent=1 // pred_fallthru
      _
    %250 = vsyncpa [#allocation3], 1
    %251 = vsyncpa [#allocation6], 1
    %252 = vsyncpa [#allocation4], 1

// kernel: tpu_custom_call.1
$region0: #{tpu_custom_call.1}
  #allocation0 [shape = 'u32[]', space=smem, size = 0x4, offset = 0x4, fixed_abs, tag = 'smem constant byte address 0x4 - core index']
  #allocation1 [shape = 'u32[144,128]{1,0:T(1,128)}', space=vmem, size = 0x12000, scoped, tag = 'internal scratch']
  %s0 = inlined_call_operand.hbm [shape: f32[8,128], index: 0, kind: input, shape index: {}]
  %s1 = inlined_call_operand.hbm [shape: f32[128,128], index: 1, kind: input, shape index: {}]
  %s2 = inlined_call_operand.hbm [shape: f32[128,128], index: 2, kind: input, shape index: {}]
  %s3 = inlined_call_operand.hbm [shape: f32[8,128], index: 3, kind: output, shape index: {}]
  %s4 = sld [smem:[#allocation0]]
  $region34: #{tpu_custom_call.1} parent=0
    _
  %s6 = ssub.s32 1, %s4
  %s7 = scalar_select 0, %s6, %s4
  $region1: #{tpu_custom_call.1} parent=0
    #allocation2 [shape = 'u8[4096]{0}', space=vmem, size = 0x1000, scoped, tag = 'input window, operand 0, single buffered']
    #allocation3 [shape = 's32[1]{0}', space=sflag, size = 0x4, scoped, tag = 'scoped memory for tpu_custom_call.1']
    #allocation4 [shape = 's32[1]{0}', space=sflag, size = 0x4, scoped, tag = 'scoped memory for tpu_custom_call.1']
    #allocation5 [shape = 'u8[65536]{0}', space=vmem, size = 0x10000, scoped, tag = 'input window, operand 1, single buffered']
    #allocation6 [shape = 's32[1]{0}', space=sflag, size = 0x4, scoped, tag = 'scoped memory for tpu_custom_call.1']
    #allocation7 [shape = 'u8[65536]{0}', space=vmem, size = 0x10000, scoped, tag = 'input window, operand 2, single buffered']
    #allocation8 [shape = 'u8[4096]{0}', space=vmem, size = 0x1000, scoped, tag = 'output window, operand 0, single buffered']
    %8 = vsyncpa [#allocation3], 0
    %9 = vsyncpa [#allocation6], 0
    %10 = vsyncpa [#allocation4], 0
    // Predicated region
    $region2: #{tpu_custom_call.1} parent=1 // pred_check
      _
    $region3: #{tpu_custom_call.1} parent=1 // pred_check_branch
      %12 = sbr.rel (0) target = $region5
    $region4: #{tpu_custom_call.1} parent=1 // pred_region
      %s14 = ssub.s32 128, 128
      %15 = vsyncadd [#allocation3], %s14
      %s17 = sshll.u32 [#allocation2], 4
      %s18 = int_to_ptr.vmem [resolvable:$true] %s17
      %20 = dma.hbm_to_vmem [thread:$0]  %s0, 128, %s18, [#allocation3]
    $region5: #{tpu_custom_call.1} parent=1 // pred_fallthru
      _
    // Predicated region
    $region6: #{tpu_custom_call.1} parent=1 // pred_check
      _
    $region7: #{tpu_custom_call.1} parent=1 // pred_check_branch
      %22 = sbr.rel (0) target = $region9
    $region8: #{tpu_custom_call.1} parent=1 // pred_region
      %s24 = ssub.s32 2048, 2048
      %25 = vsyncadd [#allocation6], %s24
      %s26 = sshll.u32 [#allocation5], 4
      %s27 = int_to_ptr.vmem [resolvable:$true] %s26
      %32 = dma.hbm_to_vmem [thread:$0]  %s1, 2048, %s27, [#allocation6], 128, 128, 8
    $region9: #{tpu_custom_call.1} parent=1 // pred_fallthru
      _
    // Predicated region
    $region10: #{tpu_custom_call.1} parent=1 // pred_check
      _
    $region11: #{tpu_custom_call.1} parent=1 // pred_check_branch
      %34 = sbr.rel (0) target = $region13
    $region12: #{tpu_custom_call.1} parent=1 // pred_region
      %s36 = ssub.s32 2048, 2048
      %37 = vsyncadd [#allocation6], %s36
      %s38 = sshll.u32 [#allocation7], 4
      %s39 = int_to_ptr.vmem [resolvable:$true] %s38
      %44 = dma.hbm_to_vmem [thread:$0]  %s2, 2048, %s39, [#allocation6], 128, 128, 8
    $region13: #{tpu_custom_call.1} parent=1 // pred_fallthru
      _
    // Predicated region
    $region14: #{tpu_custom_call.1} parent=1 // pred_check
      _
    $region15: #{tpu_custom_call.1} parent=1 // pred_check_branch
      %46 = sbr.rel (0) target = $region17
    $region16: #{tpu_custom_call.1} parent=1 // pred_region
      %47 = dma.done [#allocation3], 128
    $region17: #{tpu_custom_call.1} parent=1 // pred_fallthru
      _
    // Predicated region
    $region18: #{tpu_custom_call.1} parent=1 // pred_check
      _
    $region19: #{tpu_custom_call.1} parent=1 // pred_check_branch
      %49 = sbr.rel (0) target = $region21
    $region20: #{tpu_custom_call.1} parent=1 // pred_region
      %50 = dma.done [#allocation6], 2048
    $region21: #{tpu_custom_call.1} parent=1 // pred_fallthru
      _
    // Predicated region
    $region22: #{tpu_custom_call.1} parent=1 // pred_check
      _
    $region23: #{tpu_custom_call.1} parent=1 // pred_check_branch
      %52 = sbr.rel (0) target = $region25
    $region24: #{tpu_custom_call.1} parent=1 // pred_region
      %53 = dma.done [#allocation6], 2048
    $region25: #{tpu_custom_call.1} parent=1 // pred_fallthru
      _
    %v54 = vld [vmem:[#allocation2] sm:$0xff]
    %v55 = vld [vmem:[#allocation5] sm:$0xff]
    %v56 = vld [vmem:[#allocation5 + $0x8] sm:$0xff]
    %v57 = vld [vmem:[#allocation5 + $0x10] sm:$0xff]
    %v58 = vld [vmem:[#allocation5 + $0x18] sm:$0xff]
    %v59 = vld [vmem:[#allocation5 + $0x20] sm:$0xff]
    %v60 = vld [vmem:[#allocation5 + $0x28] sm:$0xff]
    %v61 = vld [vmem:[#allocation5 + $0x30] sm:$0xff]
    %v62 = vld [vmem:[#allocation5 + $0x38] sm:$0xff]
    %v63 = vld [vmem:[#allocation5 + $0x40] sm:$0xff]
    %v64 = vld [vmem:[#allocation5 + $0x48] sm:$0xff]
    %v65 = vld [vmem:[#allocation5 + $0x50] sm:$0xff]
    %v66 = vld [vmem:[#allocation5 + $0x58] sm:$0xff]
    %v67 = vld [vmem:[#allocation5 + $0x60] sm:$0xff]
    %v68 = vld [vmem:[#allocation5 + $0x68] sm:$0xff]
    %v69 = vld [vmem:[#allocation5 + $0x70] sm:$0xff]
    %v70 = vld [vmem:[#allocation5 + $0x78] sm:$0xff]
    %71 = vmatprep.subr.mxu0 0.0
    %72 = vmatpush1.msra.mxu0 %v70
    %73 = vmatprep.subr.mxu0 0.0
    %74 = vmatpush1.msra.mxu0 %v69
    %75 = vmatprep.subr.mxu0 0.0
    %76 = vmatpush1.msra.mxu0 %v68
    %77 = vmatprep.subr.mxu0 0.0
    %78 = vmatpush1.msra.mxu0 %v67
    %79 = vmatprep.subr.mxu0 0.0
    %80 = vmatpush1.msra.mxu0 %v66
    %81 = vmatprep.subr.mxu0 0.0
    %82 = vmatpush1.msra.mxu0 %v65
    %83 = vmatprep.subr.mxu0 0.0
    %84 = vmatpush1.msra.mxu0 %v64
    %85 = vmatprep.subr.mxu0 0.0
    %86 = vmatpush1.msra.mxu0 %v63
    %87 = vmatprep.subr.mxu0 0.0
    %88 = vmatpush1.msra.mxu0 %v62
    %89 = vmatprep.subr.mxu0 0.0
    %90 = vmatpush1.msra.mxu0 %v61
    %91 = vmatprep.subr.mxu0 0.0
    %92 = vmatpush1.msra.mxu0 %v60
    %93 = vmatprep.subr.mxu0 0.0
    %94 = vmatpush1.msra.mxu0 %v59
    %95 = vmatprep.subr.mxu0 0.0
    %96 = vmatpush1.msra.mxu0 %v58
    %97 = vmatprep.subr.mxu0 0.0
    %98 = vmatpush1.msra.mxu0 %v57
    %99 = vmatprep.subr.mxu0 0.0
    %100 = vmatpush1.msra.mxu0 %v56
    %101 = vmatprep.subr.mxu0 0.0
    %102 = vmatpush1.msra.mxu0 %v55
    %103 = vmatprep.subr.mxu0 0.0
    %104 = vmatpush2.msra.mxu0 0.0
    %105 = vmatprep.subr.mxu0 0.0
    %106 = vmatpush2.msra.mxu0 0.0
    %107 = vmatprep.subr.mxu0 0.0
    %108 = vmatpush2.msra.mxu0 0.0
    %109 = vmatprep.subr.mxu0 0.0
    %110 = vmatpush2.msra.mxu0 0.0
    %111 = vmatprep.subr.mxu0 0.0
    %112 = vmatpush2.msra.mxu0 0.0
    %113 = vmatprep.subr.mxu0 0.0
    %114 = vmatpush2.msra.mxu0 0.0
    %115 = vmatprep.subr.mxu0 0.0
    %116 = vmatpush2.msra.mxu0 0.0
    %117 = vmatprep.subr.mxu0 0.0
    %118 = vmatpush2.msra.mxu0 0.0
    %119 = vmatprep.subr.mxu0 0.0
    %120 = vmatpush2.msra.mxu0 0.0
    %121 = vmatprep.subr.mxu0 0.0
    %122 = vmatpush2.msra.mxu0 0.0
    %123 = vmatprep.subr.mxu0 0.0
    %124 = vmatpush2.msra.mxu0 0.0
    %125 = vmatprep.subr.mxu0 0.0
    %126 = vmatpush2.msra.mxu0 0.0
    %127 = vmatprep.subr.mxu0 0.0
    %128 = vmatpush2.msra.mxu0 0.0
    %129 = vmatprep.subr.mxu0 0.0
    %130 = vmatpush2.msra.mxu0 0.0
    %131 = vmatprep.subr.mxu0 0.0
    %132 = vmatpush2.msra.mxu0 0.0
    %133 = vmatprep.subr.mxu0 0.0
    %134 = vmatpush2.msra.mxu0 0.0
    %135 = vmatprep.mubr.f32.mxu0 0.0
    %136 = vmatmul.mubr.f32.gmra.mxu0 %v54
    %v137 = vpop.f32.mrf.mxu0
    %v138 = vadd.f32 0.0, %v137
    %v139 = vpop.f32.mrf.mxu0
    %140 = vdwg.mxu0
    %v141 = vmul.f32 %v138, 0.5
    %v142 = vtanh.pop %v141
    %v143 = vadd.f32 %v142, 1.0
    %v144 = vmul.f32 %v143, 0.5
    %v145 = vmul.f32 %v144, %v54
    %v146 = vld [vmem:[#allocation7] sm:$0xff]
    %v147 = vld [vmem:[#allocation7 + $0x8] sm:$0xff]
    %v148 = vld [vmem:[#allocation7 + $0x10] sm:$0xff]
    %v149 = vld [vmem:[#allocation7 + $0x18] sm:$0xff]
    %v150 = vld [vmem:[#allocation7 + $0x20] sm:$0xff]
    %v151 = vld [vmem:[#allocation7 + $0x28] sm:$0xff]
    %v152 = vld [vmem:[#allocation7 + $0x30] sm:$0xff]
    %v153 = vld [vmem:[#allocation7 + $0x38] sm:$0xff]
    %v154 = vld [vmem:[#allocation7 + $0x40] sm:$0xff]
    %v155 = vld [vmem:[#allocation7 + $0x48] sm:$0xff]
    %v156 = vld [vmem:[#allocation7 + $0x50] sm:$0xff]
    %v157 = vld [vmem:[#allocation7 + $0x58] sm:$0xff]
    %v158 = vld [vmem:[#allocation7 + $0x60] sm:$0xff]
    %v159 = vld [vmem:[#allocation7 + $0x68] sm:$0xff]
    %v160 = vld [vmem:[#allocation7 + $0x70] sm:$0xff]
    %v161 = vld [vmem:[#allocation7 + $0x78] sm:$0xff]
    %162 = vmatprep.subr.mxu0 0.0
    %163 = vmatpush1.msra.mxu0 %v161
    %164 = vmatprep.subr.mxu0 0.0
    %165 = vmatpush1.msra.mxu0 %v160
    %166 = vmatprep.subr.mxu0 0.0
    %167 = vmatpush1.msra.mxu0 %v159
    %168 = vmatprep.subr.mxu0 0.0
    %169 = vmatpush1.msra.mxu0 %v158
    %170 = vmatprep.subr.mxu0 0.0
    %171 = vmatpush1.msra.mxu0 %v157
    %172 = vmatprep.subr.mxu0 0.0
    %173 = vmatpush1.msra.mxu0 %v156
    %174 = vmatprep.subr.mxu0 0.0
    %175 = vmatpush1.msra.mxu0 %v155
    %176 = vmatprep.subr.mxu0 0.0
    %177 = vmatpush1.msra.mxu0 %v154
    %178 = vmatprep.subr.mxu0 0.0
    %179 = vmatpush1.msra.mxu0 %v153
    %180 = vmatprep.subr.mxu0 0.0
    %181 = vmatpush1.msra.mxu0 %v152
    %182 = vmatprep.subr.mxu0 0.0
    %183 = vmatpush1.msra.mxu0 %v151
    %184 = vmatprep.subr.mxu0 0.0
    %185 = vmatpush1.msra.mxu0 %v150
    %186 = vmatprep.subr.mxu0 0.0
    %187 = vmatpush1.msra.mxu0 %v149
    %188 = vmatprep.subr.mxu0 0.0
    %189 = vmatpush1.msra.mxu0 %v148
    %190 = vmatprep.subr.mxu0 0.0
    %191 = vmatpush1.msra.mxu0 %v147
    %192 = vmatprep.subr.mxu0 0.0
    %193 = vmatpush1.msra.mxu0 %v146
    %194 = vmatprep.subr.mxu0 0.0
    %195 = vmatpush2.msra.mxu0 0.0
    %196 = vmatprep.subr.mxu0 0.0
    %197 = vmatpush2.msra.mxu0 0.0
    %198 = vmatprep.subr.mxu0 0.0
    %199 = vmatpush2.msra.mxu0 0.0
    %200 = vmatprep.subr.mxu0 0.0
    %201 = vmatpush2.msra.mxu0 0.0
    %202 = vmatprep.subr.mxu0 0.0
    %203 = vmatpush2.msra.mxu0 0.0
    %204 = vmatprep.subr.mxu0 0.0
    %205 = vmatpush2.msra.mxu0 0.0
    %206 = vmatprep.subr.mxu0 0.0
    %207 = vmatpush2.msra.mxu0 0.0
    %208 = vmatprep.subr.mxu0 0.0
    %209 = vmatpush2.msra.mxu0 0.0
    %210 = vmatprep.subr.mxu0 0.0
    %211 = vmatpush2.msra.mxu0 0.0
    %212 = vmatprep.subr.mxu0 0.0
    %213 = vmatpush2.msra.mxu0 0.0
    %214 = vmatprep.subr.mxu0 0.0
    %215 = vmatpush2.msra.mxu0 0.0
    %216 = vmatprep.subr.mxu0 0.0
    %217 = vmatpush2.msra.mxu0 0.0
    %218 = vmatprep.subr.mxu0 0.0
    %219 = vmatpush2.msra.mxu0 0.0
    %220 = vmatprep.subr.mxu0 0.0
    %221 = vmatpush2.msra.mxu0 0.0
    %222 = vmatprep.subr.mxu0 0.0
    %223 = vmatpush2.msra.mxu0 0.0
    %224 = vmatprep.subr.mxu0 0.0
    %225 = vmatpush2.msra.mxu0 0.0
    %226 = vmatprep.mubr.f32.mxu0 0.0
    %227 = vmatmul.mubr.f32.gmra.mxu0 %v145
    %v228 = vpop.f32.mrf.mxu0
    %v229 = vadd.f32 0.0, %v228
    %v230 = vpop.f32.mrf.mxu0
    %231 = vdwg.mxu0
    %v232 = vtanh.pop %v229
    %v233 = vsub.f32 1.0, %v144
    %v234 = vsub.f32 %v232, %v54
    %v235 = vmul.f32 %v233, %v234
    %236 = vst [vmem:[#allocation8] sm:$0xff] %v235
    // Predicated region
    $region26: #{tpu_custom_call.1} parent=1 // pred_check
      _
    $region27: #{tpu_custom_call.1} parent=1 // pred_check_branch
      %238 = sbr.rel (0) target = $region29
    $region28: #{tpu_custom_call.1} parent=1 // pred_region
      %s240 = ssub.s32 128, 128
      %241 = vsyncadd [#allocation4], %s240
      %s243 = sshll.u32 [#allocation8], 4
      %s244 = int_to_ptr.vmem [resolvable:$true] %s243
      %246 = dma.vmem_to_hbm [thread:$0]  %s244, 128, %s3, [#allocation4]
    $region29: #{tpu_custom_call.1} parent=1 // pred_fallthru
      _
    // Predicated region
    $region30: #{tpu_custom_call.1} parent=1 // pred_check
      _
    $region31: #{tpu_custom_call.1} parent=1 // pred_check_branch
      %248 = sbr.rel (0) target = $region33
    $region32: #{tpu_custom_call.1} parent=1 // pred_region
      %249 = dma.done [#allocation4], 128
    $region33: #{tpu_custom_call.1} parent=1 // pred_fallthru
      _
    %250 = vsyncpa [#allocation3], 1
    %251 = vsyncpa [#allocation6], 1
    %252 = vsyncpa [#allocation4], 1

</llo_original>
